<compile_context>
chip_gen: v6e
topology: v6e:2x2x1
jax: 0.10.0
libtpu: 0.0.40
codegen_flags: <defaults>
</compile_context>

<pallas_src>
import functools

import jax
import jax.numpy as jnp
from jax.experimental import pallas as pl
from jax.experimental.pallas import tpu as pltpu

_LANE = 128  # vreg lane width (last dim)


def _round_up(x, m):
    return ((x + m - 1) // m) * m


def _sublane(dtype):
    # Minimum second-to-last tile dim per dtype (f32 -> 8, bf16 -> 16).
    return 16 if dtype == jnp.bfloat16 else 8


def _linear_kernel(x_ref, w_ref, b_ref, o_ref):
    # One MXU matmul per (tm, n_pad) output tile with f32 accumulation, plus a
    # broadcast VPU add for the bias. The output tile is lane-dense (n_pad is a
    # multiple of 128) so stores are unmasked vst.
    acc = jnp.dot(x_ref[...], w_ref[...], preferred_element_type=jnp.float32)
    o_ref[...] = (acc + b_ref[...]).astype(o_ref.dtype)


def prepare_params(w, b):
    """One-time parameter prep (NOT inside the jitted forward).

    w: (out_features, in_features)  -- torch nn.Linear weight layout
    b: (out_features,)
    Returns (w_padded, b_padded, out_features) with the weight pre-transposed
    to (in_features, n_pad) and bias to (1, n_pad), n_pad = ceil(out_f / 128)*128.
    """
    out_f, in_f = w.shape
    n_pad = _round_up(out_f, _LANE)
    w_t = jnp.transpose(w)  # (in_f, out_f) -> matmul-ready, no in-kernel XLU transpose
    w_p = jnp.pad(w_t, ((0, 0), (0, n_pad - out_f)))
    b_p = jnp.pad(jnp.reshape(b, (1, out_f)), ((0, 0), (0, n_pad - out_f)))
    return w_p, b_p, out_f


@functools.partial(jax.jit, static_argnames=("out_features", "force_pallas"))
def simple_regression_forward(x, w_padded, b_padded, *, out_features,
                              force_pallas=False):
    """y = x @ W.T + b, matching torch.nn.Linear(in_f, out_f)(x).

    x:        (B, in_features) float32 (or bfloat16)
    w_padded: (in_features, n_pad)   -- from prepare_params
    b_padded: (1, n_pad)             -- from prepare_params
    """
    B, in_f = x.shape
    n_pad = w_padded.shape[1]

    # Tiny-shape dispatch: below roughly (128, 512, 128) the Pallas call is pure
    # launch/DMA-setup overhead; a fused XLA dot is strictly faster.
    if not force_pallas and (B * in_f * n_pad) < (128 * 512 * 128):
        return x @ w_padded[:, :out_features] + b_padded[0, :out_features]

    sub = _sublane(x.dtype)
    tm = min(512, _round_up(B, sub))  # big batch tiles amortize per-step overhead
    grid_m = pl.cdiv(B, tm)

    y_p = pl.pallas_call(
        _linear_kernel,
        out_shape=jax.ShapeDtypeStruct((B, n_pad), x.dtype),
        grid=(grid_m,),
        in_specs=[
            # x: unpadded, tiled along the batch axis (double-buffered by Pallas).
            # Last block dim == full array extent, so no K padding is needed.
            pl.BlockSpec((tm, in_f), lambda i: (i, 0)),
            # Weight / bias: grid-invariant -> single VMEM buffer, no double-buffer.
            pl.BlockSpec((in_f, n_pad), lambda i: (0, 0),
                         pipeline_mode=pl.Buffered(1)),
            pl.BlockSpec((1, n_pad), lambda i: (0, 0),
                         pipeline_mode=pl.Buffered(1)),
        ],
        out_specs=pl.BlockSpec((tm, n_pad), lambda i: (i, 0)),
        compiler_params=pltpu.CompilerParams(
            # Independent batch tiles -> megacore sharding on v7x.
            dimension_semantics=("parallel",),
        ),
    )(x, w_padded, b_padded)

    # Strip the lane padding off the (small) output.
    return y_p[:, :out_features]


if __name__ == "__main__":
    # Small shapes consistent with the module: a batch of feature rows.
    batch = 8
    input_size = 32   # x_train.shape[-1]
    output_size = 4   # c_train.shape[-1]

    key = jax.random.PRNGKey(0)
    kx, kw, kb = jax.random.split(key, 3)

    x = jax.random.normal(kx, (batch, input_size), dtype=jnp.float32)

    # Deterministic init mimicking nn.Linear's uniform(-1/sqrt(in), 1/sqrt(in)).
    bound = 1.0 / jnp.sqrt(jnp.float32(input_size))
    w = jax.random.uniform(kw, (output_size, input_size),
                           minval=-bound, maxval=bound, dtype=jnp.float32)
    b = jax.random.uniform(kb, (output_size,),
                           minval=-bound, maxval=bound, dtype=jnp.float32)

    # One-time parameter prep (transpose + lane-dense N padding), outside the jit.
    w_padded, b_padded, out_f = prepare_params(w, b)

    # Force the Pallas path so the kernel itself is exercised at this small shape
    # (the default dispatch would take the fused XLA-dot fast path here).
    y = simple_regression_forward(x, w_padded, b_padded,
                                  out_features=out_f, force_pallas=True)
    jax.block_until_ready(y)

    # Reference check against plain JAX (same math as torch's x @ W.T + b).
    y_ref = x @ w.T + b
    assert y.shape == (batch, output_size)
    assert jnp.allclose(y, y_ref, atol=1e-5, rtol=1e-5)

    # Also sanity-check the dispatch (non-Pallas) path gives the same answer.
    y_fast = simple_regression_forward(x, w_padded, b_padded, out_features=out_f)
    jax.block_until_ready(y_fast)
    assert jnp.allclose(y_fast, y_ref, atol=1e-5, rtol=1e-5)

    print("KERNEL_OK")
</pallas_src>

<mosaic_0001>
module attributes {stable_mosaic.version = 11 : i64} {
  func.func @_linear_kernel(%arg0: i32, %arg1: memref<8x32xf32, #tpu.memory_space<vmem>>, %arg2: memref<32x128xf32, #tpu.memory_space<vmem>>, %arg3: memref<1x128xf32, #tpu.memory_space<vmem>>, %arg4: memref<8x128xf32, #tpu.memory_space<vmem>>) attributes {dimension_semantics = [#tpu.dimension_semantics<parallel>], iteration_bounds = array<i64: 1>, scalar_prefetch = 0 : i64, scratch_operands = 0 : i64, tpu.core_type = #tpu.core_type<tc>, window_params = [{transform_indices = @transform_0, window_bounds = array<i64: 8, 32>}, {pipeline_mode = #tpu.pipeline_mode<synchronous>, transform_indices = @transform_1, window_bounds = array<i64: 32, 128>}, {pipeline_mode = #tpu.pipeline_mode<synchronous>, transform_indices = @transform_2, window_bounds = array<i64: 1, 128>}, {transform_indices = @transform_3, window_bounds = array<i64: 8, 128>}]} {
    %c0 = arith.constant 0 : index
    %c0_0 = arith.constant 0 : index
    %0 = vector.load %arg1[%c0, %c0_0] : memref<8x32xf32, #tpu.memory_space<vmem>>, vector<8x32xf32>
    %c0_1 = arith.constant 0 : index
    %c0_2 = arith.constant 0 : index
    %1 = vector.load %arg2[%c0_1, %c0_2] : memref<32x128xf32, #tpu.memory_space<vmem>>, vector<32x128xf32>
    %cst = arith.constant dense<0.000000e+00> : vector<8x128xf32>
    %2 = tpu.matmul %0, %1, %cst {dimension_numbers = #tpu.dot_dimension_numbers<[1], [0], [0], [1], [0, 0, 1, 1], [], []>} : vector<8x32xf32>, vector<32x128xf32>, vector<8x128xf32> -> vector<8x128xf32>
    %c0_3 = arith.constant 0 : index
    %c0_4 = arith.constant 0 : index
    %3 = vector.load %arg3[%c0_3, %c0_4] : memref<1x128xf32, #tpu.memory_space<vmem>>, vector<1x128xf32>
    %4 = vector.broadcast %3 : vector<1x128xf32> to vector<8x128xf32>
    %5 = arith.addf %2, %4 : vector<8x128xf32>
    %c0_5 = arith.constant 0 : index
    %c0_6 = arith.constant 0 : index
    %6 = vector.load %arg4[%c0_5, %c0_6] : memref<8x128xf32, #tpu.memory_space<vmem>>, vector<8x128xf32>
    tpu.vector_store %arg4[%c0_5, %c0_6], %5 {strides = array<i32>} : memref<8x128xf32, #tpu.memory_space<vmem>>, vector<8x128xf32>,
    return
  }
  func.func @transform_0(%arg0: i32) -> (i32, i32) {
    %c0_i32 = arith.constant 0 : i32
    %c0_i32_0 = arith.constant 0 : i32
    return %arg0, %c0_i32 : i32, i32
  }
  func.func @transform_1(%arg0: i32) -> (i32, i32) {
    %c0_i32 = arith.constant 0 : i32
    %c0_i32_0 = arith.constant 0 : i32
    %c0_i32_1 = arith.constant 0 : i32
    return %c0_i32, %c0_i32_0 : i32, i32
  }
  func.func @transform_2(%arg0: i32) -> (i32, i32) {
    %c0_i32 = arith.constant 0 : i32
    %c0_i32_0 = arith.constant 0 : i32
    %c0_i32_1 = arith.constant 0 : i32
    return %c0_i32, %c0_i32_0 : i32, i32
  }
  func.func @transform_3(%arg0: i32) -> (i32, i32) {
    %c0_i32 = arith.constant 0 : i32
    %c0_i32_0 = arith.constant 0 : i32
    return %arg0, %c0_i32 : i32, i32
  }
}

</mosaic_0001>

<llo_original>
// kernel: simple_regression_forward.1
$region0: #{simple_regression_forward.1}
  #allocation0 [shape = 'u32[]', space=smem, size = 0x4, offset = 0x4, fixed_abs, tag = 'smem constant byte address 0x4 - core index']
  #allocation1 [shape = 'u32[144,128]{1,0:T(1,128)}', space=vmem, size = 0x12000, scoped, tag = 'internal scratch']
  %s0 = inlined_call_operand.hbm [shape: f32[8,32], index: 0, kind: input, shape index: {}]
  %s1 = inlined_call_operand.hbm [shape: f32[32,128], index: 1, kind: input, shape index: {}]
  %s2 = inlined_call_operand.vmem [shape: f32[1,128], index: 2, kind: input, shape index: {}]
  %s3 = inlined_call_operand.vmem [shape: f32[8,128], index: 3, kind: output, shape index: {}]
  %s4 = sld [smem:[#allocation0]]
  $region30: #{simple_regression_forward.1} parent=0
    _
  %s6 = ssub.s32 1, %s4
  %s7 = scalar_select 0, %s6, %s4
  $region1: #{simple_regression_forward.1} parent=0
    #allocation2 [shape = 'u8[4096]{0}', space=vmem, size = 0x1000, scoped, tag = 'input window, operand 0, single buffered']
    #allocation3 [shape = 's32[1]{0}', space=sflag, size = 0x4, scoped, tag = 'scoped memory for simple_regression_forward.1']
    #allocation4 [shape = 'u8[16384]{0}', space=vmem, size = 0x4000, scoped, tag = 'input window, operand 1, single buffered']
    #allocation5 [shape = 's32[1]{0}', space=sflag, size = 0x4, scoped, tag = 'scoped memory for simple_regression_forward.1']
    %8 = vsyncpa [#allocation3], 0
    %9 = vsyncpa [#allocation5], 0
    // Predicated region
    $region2: #{simple_regression_forward.1} parent=1 // pred_check
      _
    $region3: #{simple_regression_forward.1} parent=1 // pred_check_branch
      %11 = sbr.rel (0) target = $region5
    $region4: #{simple_regression_forward.1} parent=1 // pred_region
      %s13 = ssub.s32 128, 128
      %14 = vsyncadd [#allocation3], %s13
      %s16 = sshll.u32 [#allocation2], 4
      %s17 = int_to_ptr.vmem [resolvable:$true] %s16
      %19 = dma.hbm_to_vmem [thread:$0]  %s0, 128, %s17, [#allocation3]
    $region5: #{simple_regression_forward.1} parent=1 // pred_fallthru
      _
    // Predicated region
    $region6: #{simple_regression_forward.1} parent=1 // pred_check
      _
    $region7: #{simple_regression_forward.1} parent=1 // pred_check_branch
      %21 = sbr.rel (0) target = $region9
    $region8: #{simple_regression_forward.1} parent=1 // pred_region
      %s23 = ssub.s32 512, 512
      %24 = vsyncadd [#allocation5], %s23
      %s25 = sshll.u32 [#allocation4], 4
      %s26 = int_to_ptr.vmem [resolvable:$true] %s25
      %31 = dma.hbm_to_vmem [thread:$0]  %s1, 512, %s26, [#allocation5], 128, 128, 8
    $region9: #{simple_regression_forward.1} parent=1 // pred_fallthru
      _
    // Predicated region
    $region10: #{simple_regression_forward.1} parent=1 // pred_check
      _
    $region11: #{simple_regression_forward.1} parent=1 // pred_check_branch
      %33 = sbr.rel (0) target = $region13
    $region12: #{simple_regression_forward.1} parent=1 // pred_region
      _
    $region13: #{simple_regression_forward.1} parent=1 // pred_fallthru
      _
    // Predicated region
    $region14: #{simple_regression_forward.1} parent=1 // pred_check
      _
    $region15: #{simple_regression_forward.1} parent=1 // pred_check_branch
      %35 = sbr.rel (0) target = $region17
    $region16: #{simple_regression_forward.1} parent=1 // pred_region
      %36 = dma.done [#allocation3], 128
    $region17: #{simple_regression_forward.1} parent=1 // pred_fallthru
      _
    // Predicated region
    $region18: #{simple_regression_forward.1} parent=1 // pred_check
      _
    $region19: #{simple_regression_forward.1} parent=1 // pred_check_branch
      %38 = sbr.rel (0) target = $region21
    $region20: #{simple_regression_forward.1} parent=1 // pred_region
      %39 = dma.done [#allocation5], 512
    $region21: #{simple_regression_forward.1} parent=1 // pred_fallthru
      _
    %v40 = vld [vmem:[#allocation2] sm:$0xff]
    %v41 = vld [vmem:[#allocation4] sm:$0xff]
    %v42 = vld [vmem:[#allocation4 + $0x8] sm:$0xff]
    %v43 = vld [vmem:[#allocation4 + $0x10] sm:$0xff]
    %v44 = vld [vmem:[#allocation4 + $0x18] sm:$0xff]
    %v45 = vld [vmem:[%s2] sm:$0x1]
    %v47 = vlaneseq
    %v48 = vshrl.u32 %v47, 7
    %v49 = vsub.s32 0, %v48
    %v50 = vrot.slane %v45, %v49
    %vm52 = vcmask 261120
    %v54 = vsel %vm52, %v40, 0
    %56 = vmatprep.subr.mxu0 0.0
    %57 = vmatpush1.msra.mxu0 0.0
    %58 = vmatprep.subr.mxu0 0.0
    %59 = vmatpush1.msra.mxu0 0.0
    %60 = vmatprep.subr.mxu0 0.0
    %61 = vmatpush1.msra.mxu0 0.0
    %62 = vmatprep.subr.mxu0 0.0
    %63 = vmatpush1.msra.mxu0 0.0
    %64 = vmatprep.subr.mxu0 0.0
    %65 = vmatpush1.msra.mxu0 0.0
    %66 = vmatprep.subr.mxu0 0.0
    %67 = vmatpush1.msra.mxu0 0.0
    %68 = vmatprep.subr.mxu0 0.0
    %69 = vmatpush1.msra.mxu0 0.0
    %70 = vmatprep.subr.mxu0 0.0
    %71 = vmatpush1.msra.mxu0 0.0
    %72 = vmatprep.subr.mxu0 0.0
    %73 = vmatpush1.msra.mxu0 0.0
    %74 = vmatprep.subr.mxu0 0.0
    %75 = vmatpush1.msra.mxu0 0.0
    %76 = vmatprep.subr.mxu0 0.0
    %77 = vmatpush1.msra.mxu0 0.0
    %78 = vmatprep.subr.mxu0 0.0
    %79 = vmatpush1.msra.mxu0 0.0
    %80 = vmatprep.subr.mxu0 0.0
    %81 = vmatpush1.msra.mxu0 %v44
    %82 = vmatprep.subr.mxu0 0.0
    %83 = vmatpush1.msra.mxu0 %v43
    %84 = vmatprep.subr.mxu0 0.0
    %85 = vmatpush1.msra.mxu0 %v42
    %86 = vmatprep.subr.mxu0 0.0
    %87 = vmatpush1.msra.mxu0 %v41
    %88 = vmatprep.subr.mxu0 0.0
    %89 = vmatpush2.msra.mxu0 0.0
    %90 = vmatprep.subr.mxu0 0.0
    %91 = vmatpush2.msra.mxu0 0.0
    %92 = vmatprep.subr.mxu0 0.0
    %93 = vmatpush2.msra.mxu0 0.0
    %94 = vmatprep.subr.mxu0 0.0
    %95 = vmatpush2.msra.mxu0 0.0
    %96 = vmatprep.subr.mxu0 0.0
    %97 = vmatpush2.msra.mxu0 0.0
    %98 = vmatprep.subr.mxu0 0.0
    %99 = vmatpush2.msra.mxu0 0.0
    %100 = vmatprep.subr.mxu0 0.0
    %101 = vmatpush2.msra.mxu0 0.0
    %102 = vmatprep.subr.mxu0 0.0
    %103 = vmatpush2.msra.mxu0 0.0
    %104 = vmatprep.subr.mxu0 0.0
    %105 = vmatpush2.msra.mxu0 0.0
    %106 = vmatprep.subr.mxu0 0.0
    %107 = vmatpush2.msra.mxu0 0.0
    %108 = vmatprep.subr.mxu0 0.0
    %109 = vmatpush2.msra.mxu0 0.0
    %110 = vmatprep.subr.mxu0 0.0
    %111 = vmatpush2.msra.mxu0 0.0
    %112 = vmatprep.subr.mxu0 0.0
    %113 = vmatpush2.msra.mxu0 0.0
    %114 = vmatprep.subr.mxu0 0.0
    %115 = vmatpush2.msra.mxu0 0.0
    %116 = vmatprep.subr.mxu0 0.0
    %117 = vmatpush2.msra.mxu0 0.0
    %118 = vmatprep.subr.mxu0 0.0
    %119 = vmatpush2.msra.mxu0 0.0
    %120 = vmatprep.mubr.f32.mxu0 0.0
    %121 = vmatmul.mubr.f32.gmra.mxu0 %v54
    %v122 = vpop.f32.mrf.mxu0
    %v123 = vadd.f32 %v50, %v122
    %v124 = vpop.f32.mrf.mxu0
    %125 = vdwg.mxu0
    %126 = vst [vmem:[%s3] sm:$0xff] %v123
    // Predicated region
    $region22: #{simple_regression_forward.1} parent=1 // pred_check
      _
    $region23: #{simple_regression_forward.1} parent=1 // pred_check_branch
      %128 = sbr.rel (0) target = $region25
    $region24: #{simple_regression_forward.1} parent=1 // pred_region
      _
    $region25: #{simple_regression_forward.1} parent=1 // pred_fallthru
      _
    // Predicated region
    $region26: #{simple_regression_forward.1} parent=1 // pred_check
      _
    $region27: #{simple_regression_forward.1} parent=1 // pred_check_branch
      %130 = sbr.rel (0) target = $region29
    $region28: #{simple_regression_forward.1} parent=1 // pred_region
      _
    $region29: #{simple_regression_forward.1} parent=1 // pred_fallthru
      _
    %131 = vsyncpa [#allocation3], 1
    %132 = vsyncpa [#allocation5], 1

</llo_original>
